<compile_context>
chip_gen: v5e
topology: v5e:2x2
jax: 0.10.0
libtpu: 0.0.40
codegen_flags: <defaults>
</compile_context>

<pallas_src>
import functools

import jax
import jax.numpy as jnp
from jax.experimental import pallas as pl
from jax.experimental.pallas import tpu as pltpu

LANES = 128
SUBLANE_QUANTUM = 16                      # supports f32 (8) and bf16 (16) packing
PAD_QUANTUM = SUBLANE_QUANTUM * LANES     # 2048 elements
MAX_BLOCK_ROWS = 4096                     # (4096, 128) f32 = 2 MiB / input / buffer
GAMMA = 0.1


def _round_up(x, m):
    return ((x + m - 1) // m) * m


def _pick_chunk_rows(block_rows):
    for c in (64, 32, 16, 8):
        if block_rows % c == 0:
            return c
    return 8


def _pick_unroll(num_chunks):
    for u in (4, 2, 1):
        if num_chunks % u == 0:
            return u
    return 1


def _adjmse_kernel(n_ref, o_ref, l_ref, out_ref, acc_ref, *,
                   block_rows, chunk_rows, unroll):
    """Accumulate sum((o - l)^2 * adj) over one (block_rows, LANES) tile."""
    s = pl.program_id(0)
    i = pl.program_id(1)
    n_inner = pl.num_programs(1)

    @pl.when(i == 0)
    def _():
        acc_ref[...] = jnp.zeros_like(acc_ref)

    block_elems = block_rows * LANES
    num_chunks = block_rows // chunk_rows
    block_idx = s * n_inner + i
    # Number of valid elements in this block (scalar). <=0 for a duplicated
    # clamped block, < block_elems for the single partial trailing block.
    rem = n_ref[0] - block_idx * block_elems

    def tile_contrib(o, l):
        o = o.astype(jnp.float32)
        l = l.astype(jnp.float32)
        sq = (o - l) * (o - l)
        prod = o * l
        # adj > 0 -> gamma, adj < 0 -> 1 + gamma, adj == 0 keeps prod (exactly
        # 0), matching PyTorch's in-place masking that leaves adj == 0 alone.
        adj = jnp.where(prod > 0, GAMMA, jnp.where(prod < 0, 1.0 + GAMMA, prod))
        return sq * adj

    # ---- Fast path: block fully in-bounds, no masking (steady state). ----
    @pl.when(rem >= block_elems)
    def _():
        def body(c, acc):
            r = pl.multiple_of(c * chunk_rows, chunk_rows)
            contrib = tile_contrib(o_ref[pl.ds(r, chunk_rows), :],
                                   l_ref[pl.ds(r, chunk_rows), :])
            return acc + jnp.sum(
                contrib.reshape(chunk_rows // 8, 8, LANES), axis=0)

        acc_ref[...] += jax.lax.fori_loop(
            0, num_chunks, body, jnp.zeros((8, LANES), jnp.float32),
            unroll=unroll)

    # ---- Tail path: exactly one partial block pays for the mask. ----
    @pl.when(jnp.logical_and(rem > 0, rem < block_elems))
    def _():
        # Within-chunk flat offsets, hoisted once (not rebuilt per chunk step).
        row_iota = jax.lax.broadcasted_iota(jnp.int32, (chunk_rows, LANES), 0)
        lane_iota = jax.lax.broadcasted_iota(jnp.int32, (chunk_rows, LANES), 1)
        offs = row_iota * LANES + lane_iota

        def body(c, acc):
            r = pl.multiple_of(c * chunk_rows, chunk_rows)
            contrib = tile_contrib(o_ref[pl.ds(r, chunk_rows), :],
                                   l_ref[pl.ds(r, chunk_rows), :])
            thr = rem - r * LANES            # small scalar; no overflow risk
            contrib = jnp.where(offs < thr, contrib, 0.0)
            return acc + jnp.sum(
                contrib.reshape(chunk_rows // 8, 8, LANES), axis=0)

        acc_ref[...] += jax.lax.fori_loop(
            0, num_chunks, body, jnp.zeros((8, LANES), jnp.float32))

    # rem <= 0: duplicated clamped block -> contributes nothing (skipped).

    @pl.when(i == n_inner - 1)
    def _():
        out_ref[...] = jnp.sum(acc_ref[...]).reshape(1, 1, 1)


def adj_mse_loss_3a(outputs, labels, *, max_block_rows=MAX_BLOCK_ROWS,
                    buffer_count=3):
    """outputs: (B, 1) or (B,); labels: (B,).  Returns scalar f32 loss."""
    o = outputs.reshape(-1)
    l = labels.reshape(-1)
    n = o.shape[0]
    assert l.shape[0] == n

    # Lane-dense 2-D view padded to a (16, 128)-tile multiple (so f32 and bf16
    # share one layout).  For aligned n the pad is a no-op; inputs keep their
    # original dtype (upcast happens per-tile inside the kernel).
    padded = _round_up(max(n, PAD_QUANTUM), PAD_QUANTUM)
    if padded != n:
        o = jnp.pad(o, (0, padded - n))
        l = jnp.pad(l, (0, padded - n))
    rows = padded // LANES
    o2 = o.reshape(rows, LANES)
    l2 = l.reshape(rows, LANES)

    block_rows = min(_round_up(max_block_rows, SUBLANE_QUANTUM), rows)
    chunk_rows = _pick_chunk_rows(block_rows)
    unroll = _pick_unroll(block_rows // chunk_rows)

    total_blocks = pl.cdiv(rows, block_rows)
    # Two independent partial reductions so both TensorCores can stream on
    # v7x; on single-TC chips the extra split costs one grid step.
    num_splits = 2 if total_blocks >= 2 else 1
    bps = pl.cdiv(total_blocks, num_splits)

    def in_map(s, i, n_ref):
        # Clamp keeps the DMA window in-bounds; a duplicated trailing block
        # maps to the same index as the previous step (no HBM re-fetch) and
        # its compute is skipped in-kernel via the rem <= 0 guard.
        return (jnp.minimum(s * bps + i, total_blocks - 1), 0)

    buffers = max(2, min(buffer_count, bps + 1))
    in_spec = pl.BlockSpec((block_rows, LANES), in_map,
                           pipeline_mode=pl.Buffered(buffers))

    itemsize = o2.dtype.itemsize + l2.dtype.itemsize
    partials = pl.pallas_call(
        functools.partial(_adjmse_kernel, block_rows=block_rows,
                          chunk_rows=chunk_rows, unroll=unroll),
        out_shape=jax.ShapeDtypeStruct((num_splits, 1, 1), jnp.float32),
        grid_spec=pltpu.PrefetchScalarGridSpec(
            num_scalar_prefetch=1,
            grid=(num_splits, bps),
            in_specs=[in_spec, in_spec],
            out_specs=pl.BlockSpec((1, 1, 1), lambda s, i, n_ref: (s, 0, 0)),
            scratch_shapes=[pltpu.VMEM((8, LANES), jnp.float32)],
        ),
        compiler_params=pltpu.CompilerParams(
            dimension_semantics=("parallel", "arbitrary"),
            # Explicit limit so large tiles also compile on v5e (16 MiB default
            # scoped VMEM); 2 inputs x 3 buffers x 2 MiB = 12 MiB worst case.
            vmem_limit_bytes=32 * 1024 * 1024,
        ),
        cost_estimate=pl.CostEstimate(
            flops=9 * n,
            transcendentals=0,
            bytes_accessed=n * itemsize + 4 + 4 * num_splits,
        ),
    )(jnp.array([n], dtype=jnp.int32), o2, l2)
    return jnp.sum(partials) / n


def _reference(outputs, labels):
    o = jnp.squeeze(outputs).astype(jnp.float32)
    l = labels.astype(jnp.float32)
    sq = (o - l) ** 2
    prod = o * l
    adj = jnp.where(prod > 0, GAMMA, jnp.where(prod < 0, 1.0 + GAMMA, prod))
    return jnp.mean(sq * adj)


if __name__ == "__main__":
    key = jax.random.PRNGKey(0)

    # (batch, dtype, max_block_rows) — exercises: aligned single block,
    # masked tails, multi-block 2-way split with duplicate-block skip,
    # multi-chunk unrolled hot loop, and bf16 pass-through.
    cases = [
        (2048, jnp.float32, MAX_BLOCK_ROWS),
        (2500, jnp.float32, MAX_BLOCK_ROWS),
        (777, jnp.float32, MAX_BLOCK_ROWS),
        (9000, jnp.float32, 16),
        (40000, jnp.float32, 256),
        (4096, jnp.bfloat16, MAX_BLOCK_ROWS),
    ]

    for B, dtype, mbr in cases:
        k1, k2 = jax.random.split(jax.random.fold_in(key, B))
        outputs = jax.random.normal(k1, (B, 1), dtype=jnp.float32).astype(dtype)
        labels = jax.random.normal(k2, (B,), dtype=jnp.float32).astype(dtype)

        loss_fn = jax.jit(functools.partial(adj_mse_loss_3a, max_block_rows=mbr))
        loss = loss_fn(outputs, labels)
        jax.block_until_ready(loss)

        ref = _reference(outputs, labels)
        assert jnp.allclose(loss, ref, rtol=2e-5, atol=1e-6), (B, dtype, loss, ref)

    print("KERNEL_OK")
</pallas_src>

<mosaic_0001>
module attributes {stable_mosaic.version = 11 : i64} {
  func.func @_adjmse_kernel(%arg0: i32, %arg1: i32, %arg2: memref<1xi32, #tpu.memory_space<smem>>, %arg3: memref<16x128xf32, #tpu.memory_space<vmem>>, %arg4: memref<16x128xf32, #tpu.memory_space<vmem>>, %arg5: memref<1x1x1xf32, #tpu.memory_space<vmem>>, %arg6: memref<8x128xf32, #tpu.memory_space<vmem>>) attributes {dimension_semantics = [#tpu.dimension_semantics<parallel>, #tpu.dimension_semantics<arbitrary>], iteration_bounds = array<i64: 1, 1>, scalar_prefetch = 1 : i64, scratch_operands = 1 : i64, tpu.core_type = #tpu.core_type<tc>, window_params = [{pipeline_mode = #tpu.pipeline_mode<double_buffered>, transform_indices = @transform_0, window_bounds = array<i64: 16, 128>}, {pipeline_mode = #tpu.pipeline_mode<double_buffered>, transform_indices = @transform_1, window_bounds = array<i64: 16, 128>}, {transform_indices = @transform_2, window_bounds = array<i64: 1, 1, 1>}]} {
    %c0_i32 = arith.constant 0 : i32
    %0 = arith.cmpi eq, %arg1, %c0_i32 : i32
    %1 = arith.extui %0 : i1 to i32
    %c0_i32_0 = arith.constant 0 : i32
    %2 = arith.cmpi ne, %1, %c0_i32_0 : i32
    scf.if %2 {
      %cst = arith.constant 0.000000e+00 : f32
      %19 = vector.broadcast %cst : f32 to vector<8x128xf32>
      %c0_8 = arith.constant 0 : index
      %c0_9 = arith.constant 0 : index
      %20 = vector.load %arg6[%c0_8, %c0_9] : memref<8x128xf32, #tpu.memory_space<vmem>>, vector<8x128xf32>
      tpu.vector_store %arg6[%c0_8, %c0_9], %19 {strides = array<i32>} : memref<8x128xf32, #tpu.memory_space<vmem>>, vector<8x128xf32>,
    } else {
    }
    %c1_i32 = arith.constant 1 : i32
    %3 = arith.muli %arg0, %c1_i32 : i32
    %4 = arith.addi %3, %arg1 : i32
    %c0 = arith.constant 0 : index
    %5 = memref.load %arg2[%c0] : memref<1xi32, #tpu.memory_space<smem>>
    %c2048_i32 = arith.constant 2048 : i32
    %6 = arith.muli %4, %c2048_i32 : i32
    %7 = arith.subi %5, %6 : i32
    %c2048_i32_1 = arith.constant 2048 : i32
    %8 = arith.cmpi sge, %7, %c2048_i32_1 : i32
    %9 = arith.extui %8 : i1 to i32
    %c0_i32_2 = arith.constant 0 : i32
    %10 = arith.cmpi ne, %9, %c0_i32_2 : i32
    scf.if %10 {
      %c0_8 = arith.constant 0 : index
      %c0_9 = arith.constant 0 : index
      %19 = vector.load %arg6[%c0_8, %c0_9] : memref<8x128xf32, #tpu.memory_space<vmem>>, vector<8x128xf32>
      %cst = arith.constant 0.000000e+00 : f32
      %20 = vector.broadcast %cst : f32 to vector<8x128xf32>
      %c0_i32_10 = arith.constant 0 : i32
      %c16_i32 = arith.constant 16 : i32
      %21 = arith.muli %c0_i32_10, %c16_i32 : i32
      %22 = tpu.assume_multiple %21, 16 : i32
      %23 = arith.index_cast %22 : i32 to index
      %c0_11 = arith.constant 0 : index
      %24 = vector.load %arg3[%23, %c0_11] : memref<16x128xf32, #tpu.memory_space<vmem>>, vector<16x128xf32>
      %25 = arith.index_cast %22 : i32 to index
      %c0_12 = arith.constant 0 : index
      %26 = vector.load %arg4[%25, %c0_12] : memref<16x128xf32, #tpu.memory_space<vmem>>, vector<16x128xf32>
      %27 = arith.subf %24, %26 : vector<16x128xf32>
      %28 = arith.subf %24, %26 : vector<16x128xf32>
      %29 = arith.mulf %27, %28 : vector<16x128xf32>
      %30 = arith.mulf %24, %26 : vector<16x128xf32>
      %cst_13 = arith.constant 0.000000e+00 : f32
      %31 = vector.broadcast %cst_13 : f32 to vector<16x128xf32>
      %32 = arith.cmpf ogt, %30, %31 : vector<16x128xf32>
      %cst_14 = arith.constant 0.000000e+00 : f32
      %33 = vector.broadcast %cst_14 : f32 to vector<16x128xf32>
      %34 = arith.cmpf olt, %30, %33 : vector<16x128xf32>
      %cst_15 = arith.constant 1.100000e+00 : f32
      %35 = vector.broadcast %cst_15 : f32 to vector<16x128xf32>
      %36 = arith.select %34, %35, %30 : vector<16x128xi1>, vector<16x128xf32>
      %cst_16 = arith.constant 1.000000e-01 : f32
      %37 = vector.broadcast %cst_16 : f32 to vector<16x128xf32>
      %38 = arith.select %32, %37, %36 : vector<16x128xi1>, vector<16x128xf32>
      %39 = arith.mulf %29, %38 : vector<16x128xf32>
      %40 = vector.shape_cast %39 : vector<16x128xf32> to vector<2x8x128xf32>
      %cst_17 = arith.constant dense<0.000000e+00> : vector<8x128xf32>
      %41 = vector.multi_reduction <add>, %40, %cst_17 [0] : vector<2x8x128xf32> to vector<8x128xf32>
      %42 = arith.addf %20, %41 : vector<8x128xf32>
      %c1_i32_18 = arith.constant 1 : i32
      %43 = arith.addf %19, %42 : vector<8x128xf32>
      %c0_19 = arith.constant 0 : index
      %c0_20 = arith.constant 0 : index
      %44 = vector.load %arg6[%c0_19, %c0_20] : memref<8x128xf32, #tpu.memory_space<vmem>>, vector<8x128xf32>
      tpu.vector_store %arg6[%c0_19, %c0_20], %43 {strides = array<i32>} : memref<8x128xf32, #tpu.memory_space<vmem>>, vector<8x128xf32>,
    } else {
    }
    %c0_i32_3 = arith.constant 0 : i32
    %11 = arith.cmpi sgt, %7, %c0_i32_3 : i32
    %c2048_i32_4 = arith.constant 2048 : i32
    %12 = arith.cmpi slt, %7, %c2048_i32_4 : i32
    %13 = arith.andi %11, %12 : i1
    %14 = arith.extui %13 : i1 to i32
    %c0_i32_5 = arith.constant 0 : i32
    %15 = arith.cmpi ne, %14, %c0_i32_5 : i32
    scf.if %15 {
      %19 = tpu.iota {dimensions = array<i32: 0>} : vector<16x128xi32>
      %20 = tpu.iota {dimensions = array<i32: 1>} : vector<16x128xi32>
      %c128_i32 = arith.constant 128 : i32
      %21 = vector.broadcast %c128_i32 : i32 to vector<16x128xi32>
      %22 = arith.muli %19, %21 : vector<16x128xi32>
      %23 = arith.addi %22, %20 : vector<16x128xi32>
      %c0_8 = arith.constant 0 : index
      %c0_9 = arith.constant 0 : index
      %24 = vector.load %arg6[%c0_8, %c0_9] : memref<8x128xf32, #tpu.memory_space<vmem>>, vector<8x128xf32>
      %cst = arith.constant 0.000000e+00 : f32
      %25 = vector.broadcast %cst : f32 to vector<8x128xf32>
      %c0_i32_10 = arith.constant 0 : i32
      %c16_i32 = arith.constant 16 : i32
      %26 = arith.muli %c0_i32_10, %c16_i32 : i32
      %27 = tpu.assume_multiple %26, 16 : i32
      %28 = arith.index_cast %27 : i32 to index
      %c0_11 = arith.constant 0 : index
      %29 = vector.load %arg3[%28, %c0_11] : memref<16x128xf32, #tpu.memory_space<vmem>>, vector<16x128xf32>
      %30 = arith.index_cast %27 : i32 to index
      %c0_12 = arith.constant 0 : index
      %31 = vector.load %arg4[%30, %c0_12] : memref<16x128xf32, #tpu.memory_space<vmem>>, vector<16x128xf32>
      %32 = arith.subf %29, %31 : vector<16x128xf32>
      %33 = arith.subf %29, %31 : vector<16x128xf32>
      %34 = arith.mulf %32, %33 : vector<16x128xf32>
      %35 = arith.mulf %29, %31 : vector<16x128xf32>
      %cst_13 = arith.constant 0.000000e+00 : f32
      %36 = vector.broadcast %cst_13 : f32 to vector<16x128xf32>
      %37 = arith.cmpf ogt, %35, %36 : vector<16x128xf32>
      %cst_14 = arith.constant 0.000000e+00 : f32
      %38 = vector.broadcast %cst_14 : f32 to vector<16x128xf32>
      %39 = arith.cmpf olt, %35, %38 : vector<16x128xf32>
      %cst_15 = arith.constant 1.100000e+00 : f32
      %40 = vector.broadcast %cst_15 : f32 to vector<16x128xf32>
      %41 = arith.select %39, %40, %35 : vector<16x128xi1>, vector<16x128xf32>
      %cst_16 = arith.constant 1.000000e-01 : f32
      %42 = vector.broadcast %cst_16 : f32 to vector<16x128xf32>
      %43 = arith.select %37, %42, %41 : vector<16x128xi1>, vector<16x128xf32>
      %44 = arith.mulf %34, %43 : vector<16x128xf32>
      %c128_i32_17 = arith.constant 128 : i32
      %45 = arith.muli %27, %c128_i32_17 : i32
      %46 = arith.subi %7, %45 : i32
      %47 = vector.broadcast %46 : i32 to vector<16x128xi32>
      %48 = arith.cmpi slt, %23, %47 : vector<16x128xi32>
      %cst_18 = arith.constant 0.000000e+00 : f32
      %49 = vector.broadcast %cst_18 : f32 to vector<16x128xf32>
      %50 = arith.select %48, %44, %49 : vector<16x128xi1>, vector<16x128xf32>
      %51 = vector.shape_cast %50 : vector<16x128xf32> to vector<2x8x128xf32>
      %cst_19 = arith.constant dense<0.000000e+00> : vector<8x128xf32>
      %52 = vector.multi_reduction <add>, %51, %cst_19 [0] : vector<2x8x128xf32> to vector<8x128xf32>
      %53 = arith.addf %25, %52 : vector<8x128xf32>
      %c1_i32_20 = arith.constant 1 : i32
      %54 = arith.addf %24, %53 : vector<8x128xf32>
      %c0_21 = arith.constant 0 : index
      %c0_22 = arith.constant 0 : index
      %55 = vector.load %arg6[%c0_21, %c0_22] : memref<8x128xf32, #tpu.memory_space<vmem>>, vector<8x128xf32>
      tpu.vector_store %arg6[%c0_21, %c0_22], %54 {strides = array<i32>} : memref<8x128xf32, #tpu.memory_space<vmem>>, vector<8x128xf32>,
    } else {
    }
    %c0_i32_6 = arith.constant 0 : i32
    %16 = arith.cmpi eq, %arg1, %c0_i32_6 : i32
    %17 = arith.extui %16 : i1 to i32
    %c0_i32_7 = arith.constant 0 : i32
    %18 = arith.cmpi ne, %17, %c0_i32_7 : i32
    scf.if %18 {
      %c0_8 = arith.constant 0 : index
      %c0_9 = arith.constant 0 : index
      %19 = vector.load %arg6[%c0_8, %c0_9] : memref<8x128xf32, #tpu.memory_space<vmem>>, vector<8x128xf32>
      %20 = vector.shape_cast %19 : vector<8x128xf32> to vector<1x8x128xf32>
      %cst = arith.constant dense<0.000000e+00> : vector<1xf32>
      %21 = vector.multi_reduction <add>, %20, %cst [1, 2] : vector<1x8x128xf32> to vector<1xf32>
      %22 = vector.shape_cast %21 : vector<1xf32> to vector<1x1x1xf32>
      %23 = vector.extract %22[0, 0, 0] : f32 from vector<1x1x1xf32>
      %24 = vector.broadcast %23 : f32 to vector<1x1x1xf32>
      %c0_10 = arith.constant 0 : index
      %c0_11 = arith.constant 0 : index
      %c0_12 = arith.constant 0 : index
      %25 = vector.load %arg5[%c0_10, %c0_11, %c0_12] : memref<1x1x1xf32, #tpu.memory_space<vmem>>, vector<1x1x1xf32>
      tpu.vector_store %arg5[%c0_10, %c0_11, %c0_12], %24 {strides = array<i32>} : memref<1x1x1xf32, #tpu.memory_space<vmem>>, vector<1x1x1xf32>,
    } else {
    }
    return
  }
  func.func @transform_0(%arg0: i32, %arg1: i32, %arg2: memref<1xi32, #tpu.memory_space<smem>>) -> (i32, i32) {
    %c1_i32 = arith.constant 1 : i32
    %0 = arith.muli %arg0, %c1_i32 : i32
    %1 = arith.addi %0, %arg1 : i32
    %c0_i32 = arith.constant 0 : i32
    %2 = arith.minsi %1, %c0_i32 : i32
    %c0_i32_0 = arith.constant 0 : i32
    %c0_i32_1 = arith.constant 0 : i32
    return %2, %c0_i32_0 : i32, i32
  }
  func.func @transform_1(%arg0: i32, %arg1: i32, %arg2: memref<1xi32, #tpu.memory_space<smem>>) -> (i32, i32) {
    %c1_i32 = arith.constant 1 : i32
    %0 = arith.muli %arg0, %c1_i32 : i32
    %1 = arith.addi %0, %arg1 : i32
    %c0_i32 = arith.constant 0 : i32
    %2 = arith.minsi %1, %c0_i32 : i32
    %c0_i32_0 = arith.constant 0 : i32
    %c0_i32_1 = arith.constant 0 : i32
    return %2, %c0_i32_0 : i32, i32
  }
  func.func @transform_2(%arg0: i32, %arg1: i32, %arg2: memref<1xi32, #tpu.memory_space<smem>>) -> (i32, i32, i32) {
    %c0_i32 = arith.constant 0 : i32
    %c0_i32_0 = arith.constant 0 : i32
    %c0_i32_1 = arith.constant 0 : i32
    return %arg0, %c0_i32, %c0_i32_0 : i32, i32, i32
  }
}

</mosaic_0001>

<llo_original>
// kernel: adj_mse_loss_3a.1
$region0: #{adj_mse_loss_3a.1}
  #allocation0 [shape = 'u32[]', space=smem, size = 0x4, offset = 0x4, fixed_abs, tag = 'smem constant byte address 0x4 - core index']
  #allocation1 [shape = 'u32[72,128]{1,0:T(1,128)}', space=vmem, size = 0x9000, scoped, tag = 'internal scratch']
  #allocation2 [shape = 'f32[8,128]{1,0:T(8,128)}', space=vmem, size = 0x1000, scoped, tag = 'scratch operand']
  #allocation3 [shape = 's32[1]{0}', space=sflag, size = 0x4, scoped, tag = 'scoped memory for adj_mse_loss_3a.1']
  #allocation4 [shape = 's32[1]{0:T(128)S(6)}', space=smem, size = 0x200, scoped, tag = 'prefetched SMEM operand 0']
  %s0 = inlined_call_operand.<no memory space> [shape: s32[1], index: 0, kind: input, shape index: {}]
  %s1 = inlined_call_operand.hbm [shape: f32[16,128], index: 1, kind: input, shape index: {}]
  %s2 = inlined_call_operand.hbm [shape: f32[16,128], index: 2, kind: input, shape index: {}]
  %s3 = inlined_call_operand.hbm [shape: f32[1,1,1], index: 3, kind: output, shape index: {}]
  %s4 = sld [smem:[#allocation0]]
  $region42: #{adj_mse_loss_3a.1} parent=0
    _
  %s6 = ssub.s32 1, %s4
  %s7 = scalar_select 0, %s6, %s4
  %8 = sst [smem:[#allocation4]] %s0
  $region1: #{adj_mse_loss_3a.1} parent=0
    #allocation5 [shape = 'u8[8192]{0}', space=vmem, size = 0x2000, scoped, tag = 'input window, operand 1, single buffered']
    #allocation6 [shape = 's32[1]{0}', space=sflag, size = 0x4, scoped, tag = 'scoped memory for adj_mse_loss_3a.1']
    #allocation7 [shape = 's32[1]{0}', space=sflag, size = 0x4, scoped, tag = 'scoped memory for adj_mse_loss_3a.1']
    #allocation8 [shape = 'u8[8192]{0}', space=vmem, size = 0x2000, scoped, tag = 'input window, operand 2, single buffered']
    #allocation9 [shape = 's32[1]{0}', space=sflag, size = 0x4, scoped, tag = 'scoped memory for adj_mse_loss_3a.1']
    #allocation10 [shape = 'u8[512]{0}', space=vmem, size = 0x400, scoped, tag = 'output window, operand 0, single buffered']
    %9 = vsyncpa [#allocation6], 0
    %10 = vsyncpa [#allocation9], 0
    %11 = vsyncpa [#allocation7], 0
    // Predicated region
    $region2: #{adj_mse_loss_3a.1} parent=1 // pred_check
      _
    $region3: #{adj_mse_loss_3a.1} parent=1 // pred_check_branch
      %13 = sbr.rel (0) target = $region5
    $region4: #{adj_mse_loss_3a.1} parent=1 // pred_region
      %s14 = sadd.s32 0, 0
      %p15 = scmp.lt.s32.totalorder %s14, 0
      %s16 = scalar_select %p15, %s14, 0
      %s17 = smul.u32 2, %s16
      %19 = vsyncadd [#allocation6], 0
      %s20 = smul.addr %s17, 8
      %s21 = scalar_lea.hbm %s1, %s20
      %s22 = sshll.u32 %s21, 4
      %s23 = int_to_ptr.hbm [resolvable:$true] %s22
      %s24 = sshll.u32 [#allocation5], 4
      %s25 = int_to_ptr.vmem [resolvable:$true] %s24
      %30 = dma.hbm_to_vmem [thread:$0]  %s23, 256, %s25, [#allocation6], 128, 128, 8
    $region5: #{adj_mse_loss_3a.1} parent=1 // pred_fallthru
      _
    // Predicated region
    $region6: #{adj_mse_loss_3a.1} parent=1 // pred_check
      _
    $region7: #{adj_mse_loss_3a.1} parent=1 // pred_check_branch
      %32 = sbr.rel (0) target = $region9
    $region8: #{adj_mse_loss_3a.1} parent=1 // pred_region
      %s33 = sadd.s32 0, 0
      %p34 = scmp.lt.s32.totalorder %s33, 0
      %s35 = scalar_select %p34, %s33, 0
      %s36 = smul.u32 2, %s35
      %38 = vsyncadd [#allocation9], 0
      %s39 = smul.addr %s36, 8
      %s40 = scalar_lea.hbm %s2, %s39
      %s41 = sshll.u32 %s40, 4
      %s42 = int_to_ptr.hbm [resolvable:$true] %s41
      %s43 = sshll.u32 [#allocation8], 4
      %s44 = int_to_ptr.vmem [resolvable:$true] %s43
      %49 = dma.hbm_to_vmem [thread:$0]  %s42, 256, %s44, [#allocation9], 128, 128, 8
    $region9: #{adj_mse_loss_3a.1} parent=1 // pred_fallthru
      _
    // Predicated region
    $region10: #{adj_mse_loss_3a.1} parent=1 // pred_check
      _
    $region11: #{adj_mse_loss_3a.1} parent=1 // pred_check_branch
      %51 = sbr.rel (0) target = $region13
    $region12: #{adj_mse_loss_3a.1} parent=1 // pred_region
      %53 = dma.done [#allocation6], 256
    $region13: #{adj_mse_loss_3a.1} parent=1 // pred_fallthru
      _
    // Predicated region
    $region14: #{adj_mse_loss_3a.1} parent=1 // pred_check
      _
    $region15: #{adj_mse_loss_3a.1} parent=1 // pred_check_branch
      %55 = sbr.rel (0) target = $region17
    $region16: #{adj_mse_loss_3a.1} parent=1 // pred_region
      %57 = dma.done [#allocation9], 256
    $region17: #{adj_mse_loss_3a.1} parent=1 // pred_fallthru
      _
    %s58 = sadd.s32 0, 0
    %p59 = scmp.lt.s32.totalorder %s58, 0
    %s60 = scalar_select %p59, %s58, 0
    %s61 = smul.u32 2, %s60
    %s62 = sadd.s32 0, 0
    %p63 = scmp.lt.s32.totalorder %s62, 0
    %s64 = scalar_select %p63, %s62, 0
    %s65 = smul.u32 2, %s64
    %p66 = scmp.eq.s32.totalorder 0, 0
    // Predicated region
    $region18: #{adj_mse_loss_3a.1} parent=1 // pred_check
      %p67 = pneg %p66
    $region19: #{adj_mse_loss_3a.1} parent=1 // pred_check_branch
      %69 = sbr.rel (%p67) target = $region21
    $region20: #{adj_mse_loss_3a.1} parent=1 // pred_region
      %70 = vst [vmem:[#allocation2] sm:$0xff] 0.0
    $region21: #{adj_mse_loss_3a.1} parent=1 // pred_fallthru
      _
    %s71 = sadd.s32 0, 0
    %s72 = sld [smem:[#allocation4]]
    %s73 = smul.u32 %s71, 2048
    %s74 = ssub.s32 %s72, %s73
    %p75 = scmp.ge.s32.totalorder %s74, 2048
    // Predicated region
    $region22: #{adj_mse_loss_3a.1} parent=1 // pred_check
      %p76 = pneg %p75
    $region23: #{adj_mse_loss_3a.1} parent=1 // pred_check_branch
      %78 = sbr.rel (%p76) target = $region25
    $region24: #{adj_mse_loss_3a.1} parent=1 // pred_region
      %v79 = vld [vmem:[#allocation2] sm:$0xff]
      %v80 = vld [vmem:[#allocation5] sm:$0xff]
      %v81 = vld [vmem:[#allocation5 + $0x8] sm:$0xff]
      %v82 = vld [vmem:[#allocation8] sm:$0xff]
      %v83 = vld [vmem:[#allocation8 + $0x8] sm:$0xff]
      %v84 = vsub.f32 %v80, %v82
      %v85 = vsub.f32 %v81, %v83
      %v86 = vmul.f32 %v84, %v84
      %v87 = vmul.f32 %v85, %v85
      %v88 = vmul.f32 %v80, %v82
      %v89 = vmul.f32 %v81, %v83
      %vm90 = vcmp.gt.f32.partialorder %v88, 0.0
      %vm91 = vcmp.gt.f32.partialorder %v89, 0.0
      %vm92 = vcmp.lt.f32.partialorder %v88, 0.0
      %vm93 = vcmp.lt.f32.partialorder %v89, 0.0
      %v94 = vsel %vm92, 1.1, %v88
      %v95 = vsel %vm93, 1.1, %v89
      %v96 = vsel %vm90, 0.1, %v94
      %v97 = vsel %vm91, 0.1, %v95
      %v98 = vmul.f32 %v86, %v96
      %v99 = vmul.f32 %v87, %v97
      %v100 = vadd.f32 %v98, %v99
      %v101 = vadd.f32 %v100, 0.0
      %v102 = vadd.f32 %v79, %v101
      %103 = vst [vmem:[#allocation2] sm:$0xff] %v102
    $region25: #{adj_mse_loss_3a.1} parent=1 // pred_fallthru
      _
    %p104 = scmp.gt.s32.totalorder %s74, 0
    %p105 = scmp.lt.s32.totalorder %s74, 2048
    %p106 = pnand %p104, %p105
    %p107 = pneg %p106
    // Predicated region
    $region26: #{adj_mse_loss_3a.1} parent=1 // pred_check
      _
    $region27: #{adj_mse_loss_3a.1} parent=1 // pred_check_branch
      %109 = sbr.rel (%p106) target = $region29
    $region28: #{adj_mse_loss_3a.1} parent=1 // pred_region
      %v110 = vlaneseq
      %v111 = vshrl.u32 %v110, 7
      %v112 = vadd.s32 %v111, 8
      %v113 = vlaneseq
      %v114 = vand.u32 %v113, 127
      %v115 = vmul.u32 %v111, 128
      %v116 = vmul.u32 %v112, 128
      %v117 = vadd.s32 %v115, %v114
      %v118 = vadd.s32 %v116, %v114
      %v119 = vld [vmem:[#allocation2] sm:$0xff]
      %v120 = vld [vmem:[#allocation5] sm:$0xff]
      %v121 = vld [vmem:[#allocation5 + $0x8] sm:$0xff]
      %v122 = vld [vmem:[#allocation8] sm:$0xff]
      %v123 = vld [vmem:[#allocation8 + $0x8] sm:$0xff]
      %v124 = vsub.f32 %v120, %v122
      %v125 = vsub.f32 %v121, %v123
      %v126 = vmul.f32 %v124, %v124
      %v127 = vmul.f32 %v125, %v125
      %v128 = vmul.f32 %v120, %v122
      %v129 = vmul.f32 %v121, %v123
      %vm130 = vcmp.gt.f32.partialorder %v128, 0.0
      %vm131 = vcmp.gt.f32.partialorder %v129, 0.0
      %vm132 = vcmp.lt.f32.partialorder %v128, 0.0
      %vm133 = vcmp.lt.f32.partialorder %v129, 0.0
      %v134 = vsel %vm132, 1.1, %v128
      %v135 = vsel %vm133, 1.1, %v129
      %v136 = vsel %vm130, 0.1, %v134
      %v137 = vsel %vm131, 0.1, %v135
      %v138 = vmul.f32 %v126, %v136
      %v139 = vmul.f32 %v127, %v137
      %s140 = smul.u32 0, 128
      %s141 = ssub.s32 %s74, %s140
      %v142 = vstv %s141
      %vm143 = vcmp.lt.s32.totalorder %v117, %v142
      %vm144 = vcmp.lt.s32.totalorder %v118, %v142
      %v145 = vsel %vm143, %v138, 0.0
      %v146 = vsel %vm144, %v139, 0.0
      %v147 = vadd.f32 %v145, %v146
      %v148 = vadd.f32 %v147, 0.0
      %v149 = vadd.f32 %v119, %v148
      %150 = vst [vmem:[#allocation2] sm:$0xff] %v149
    $region29: #{adj_mse_loss_3a.1} parent=1 // pred_fallthru
      _
    // Predicated region
    $region30: #{adj_mse_loss_3a.1} parent=1 // pred_check
      %p151 = pneg %p66
    $region31: #{adj_mse_loss_3a.1} parent=1 // pred_check_branch
      %153 = sbr.rel (%p151) target = $region33
    $region32: #{adj_mse_loss_3a.1} parent=1 // pred_region
      %v154 = vld [vmem:[#allocation2] sm:$0xff]
      %155 = vadd.xlane.f32.xlu0 %v154
      %v156 = vpop.xlane.xlu0 %155
      %v157 = vrot.slane %v156, 4
      %v158 = vadd.f32 %v156, %v157
      %v159 = vrot.slane %v158, 2
      %v160 = vadd.f32 %v158, %v159
      %v161 = vrot.slane %v160, 1
      %v162 = vadd.f32 %v160, %v161
      %s163 = vtos %v162
      %v164 = vstv %s163
      %vm165 = vcmask 0
      %166 = vst.msk [vmem:[#allocation10] sm:$0x1] %vm165, %v164
    $region33: #{adj_mse_loss_3a.1} parent=1 // pred_fallthru
      _
    // Predicated region
    $region34: #{adj_mse_loss_3a.1} parent=1 // pred_check
      _
    $region35: #{adj_mse_loss_3a.1} parent=1 // pred_check_branch
      %168 = sbr.rel (0) target = $region37
    $region36: #{adj_mse_loss_3a.1} parent=1 // pred_region
      %170 = vsyncadd [#allocation7], 0
      %s172 = sshll.u32 [#allocation10], 4
      %s173 = int_to_ptr.vmem [resolvable:$true] %s172
      %s174 = sshll.u32 %s3, 4
      %s175 = int_to_ptr.hbm [resolvable:$true] %s174
      %177 = dma.vmem_to_hbm [thread:$0]  %s173, 16, %s175, [#allocation7]
    $region37: #{adj_mse_loss_3a.1} parent=1 // pred_fallthru
      _
    // Predicated region
    $region38: #{adj_mse_loss_3a.1} parent=1 // pred_check
      _
    $region39: #{adj_mse_loss_3a.1} parent=1 // pred_check_branch
      %179 = sbr.rel (0) target = $region41
    $region40: #{adj_mse_loss_3a.1} parent=1 // pred_region
      %181 = dma.done [#allocation7], 16
    $region41: #{adj_mse_loss_3a.1} parent=1 // pred_fallthru
      _
    %182 = vsyncpa [#allocation6], 1
    %183 = vsyncpa [#allocation9], 1
    %184 = vsyncpa [#allocation7], 1

</llo_original>
